<compile_context>
chip_gen: v7x
topology: tpu7x:2x2x1
jax: 0.10.0
libtpu: 0.0.40
codegen_flags: <defaults>
</compile_context>

<pallas_src>
import functools

import jax
import jax.numpy as jnp
from jax.experimental import pallas as pl
from jax.experimental.pallas import tpu as pltpu


# --------------------------------------------------------------------------- #
# Kernels
# --------------------------------------------------------------------------- #
def _bn_stats_kernel(x_ref, mean_ref, var_ref, *, n_rows, block_rows):
    """Accumulate per-channel sum / sum-of-squares; finalize to mean / unbiased var."""
    r = pl.program_id(0)

    @pl.when(r == 0)
    def _init():
        mean_ref[...] = jnp.zeros_like(mean_ref)
        var_ref[...] = jnp.zeros_like(var_ref)

    x = x_ref[...].astype(jnp.float32)
    # Mask rows that fall past the end of the array (last, possibly partial tile).
    row_ids = jax.lax.broadcasted_iota(jnp.int32, x.shape, 0) + r * block_rows
    x = jnp.where(row_ids < n_rows, x, 0.0)

    mean_ref[...] += jnp.sum(x, axis=0, keepdims=True)        # running sum
    var_ref[...] += jnp.sum(x * x, axis=0, keepdims=True)     # running sum of squares

    @pl.when(r == pl.num_programs(0) - 1)
    def _finalize():
        inv_n = 1.0 / n_rows
        mean = mean_ref[...] * inv_n
        inv_nm1 = 1.0 / max(n_rows - 1, 1)                    # unbiased (torch.var default)
        var = (var_ref[...] - n_rows * mean * mean) * inv_nm1
        mean_ref[...] = mean
        var_ref[...] = jnp.maximum(var, 0.0)


def _bn_norm_kernel(x_ref, mean_ref, var_ref, gamma_ref, beta_ref, o_ref, *, eps):
    """out = gamma * (x - mean) / sqrt(var + eps) + beta, as x * scale + shift."""
    mean = mean_ref[...]                                        # (1, D) f32
    var = var_ref[...]                                          # (1, D) f32
    rstd = jax.lax.rsqrt(var + eps)
    scale = gamma_ref[...] * rstd                               # (1, D)
    shift = beta_ref[...] - mean * scale                        # (1, D)
    x = x_ref[...].astype(jnp.float32)                          # (TR, D)
    o_ref[...] = (x * scale + shift).astype(o_ref.dtype)


# --------------------------------------------------------------------------- #
# Wrappers
# --------------------------------------------------------------------------- #
def _pick_block_rows(n_rows, feat, itemsize):
    """Largest row tile (multiple of 8) with <= ~4 MiB per pipelined buffer."""
    if n_rows <= 8:
        return n_rows  # block equals full first dim -> no (8,128) constraint
    budget = 4 * 1024 * 1024
    for tr in (1024, 512, 256, 128, 64, 32, 16, 8):
        if tr <= n_rows and tr * feat * itemsize <= budget:
            return tr
    return 8


def _batch_stats(x2d):
    n, d = x2d.shape
    tr = _pick_block_rows(n, d, x2d.dtype.itemsize)
    grid = (pl.cdiv(n, tr),)
    kernel = functools.partial(_bn_stats_kernel, n_rows=n, block_rows=tr)
    mean, var = pl.pallas_call(
        kernel,
        out_shape=(jax.ShapeDtypeStruct((1, d), jnp.float32),
                   jax.ShapeDtypeStruct((1, d), jnp.float32)),
        grid=grid,
        in_specs=[pl.BlockSpec((tr, d), lambda r: (r, 0))],
        out_specs=(pl.BlockSpec((1, d), lambda r: (0, 0)),   # resident accumulator
                   pl.BlockSpec((1, d), lambda r: (0, 0))),
        compiler_params=pltpu.CompilerParams(
            dimension_semantics=("arbitrary",)),              # reduction axis
    )(x2d)
    return mean, var


def _normalize(x2d, mean, var, gamma, beta, eps, out_dtype):
    n, d = x2d.shape
    tr = _pick_block_rows(n, d, x2d.dtype.itemsize)
    grid = (pl.cdiv(n, tr),)
    kernel = functools.partial(_bn_norm_kernel, eps=eps)
    vec_spec = pl.BlockSpec((1, d), lambda r: (0, 0))
    return pl.pallas_call(
        kernel,
        out_shape=jax.ShapeDtypeStruct((n, d), out_dtype),
        grid=grid,
        in_specs=[pl.BlockSpec((tr, d), lambda r: (r, 0)),
                  vec_spec, vec_spec, vec_spec, vec_spec],
        out_specs=pl.BlockSpec((tr, d), lambda r: (r, 0)),
        compiler_params=pltpu.CompilerParams(
            dimension_semantics=("parallel",)),               # independent row tiles
    )(x2d, mean, var,
      gamma.reshape(1, d).astype(jnp.float32),
      beta.reshape(1, d).astype(jnp.float32))


def batchnorm1d(x, gamma, beta, running_mean, running_var,
                *, eps=1e-5, momentum=0.1, training=True):
    """Functional forward of the spec BatchNorm1d.

    Returns (out, new_running_mean, new_running_var).
    """
    if x.ndim == 2:
        x2d = x
    elif x.ndim == 3:
        B, T, D = x.shape
        x2d = x.reshape(B * T, D)        # contiguous -> metadata-only reshape
    else:
        raise NotImplementedError("Number of input dimensions must be 2 or 3.")
    n, d = x2d.shape

    if training:
        mean, var = _batch_stats(x2d)                        # (1, d) f32 each
    else:
        mean = running_mean.reshape(1, d).astype(jnp.float32)
        var = running_var.reshape(1, d).astype(jnp.float32)

    out = _normalize(x2d, mean, var, gamma, beta, eps, x.dtype).reshape(x.shape)

    if training:
        # Running-stat EMA: trivial dim-length vector ops, done in the wrapper.
        new_rm = running_mean * (1.0 - momentum) + mean.reshape(d) * momentum
        new_rv = running_var * (1.0 - momentum) + var.reshape(d) * momentum
    else:
        new_rm, new_rv = running_mean, running_var
    return out, new_rm, new_rv


# --------------------------------------------------------------------------- #
# Self-test
# --------------------------------------------------------------------------- #
if __name__ == "__main__":
    key = jax.random.PRNGKey(0)
    k1, k2, k3, k4, k5, k6 = jax.random.split(key, 6)

    # --- 3-D case: (B=2, T=8, dim=128), training mode ---
    B, T, D = 2, 8, 128
    x = jax.random.normal(k1, (B, T, D), dtype=jnp.float32)
    gamma = 1.0 + 0.1 * jax.random.normal(k2, (D,), dtype=jnp.float32)
    beta = 0.1 * jax.random.normal(k3, (D,), dtype=jnp.float32)
    rm = jnp.zeros((D,), jnp.float32)
    rv = jnp.ones((D,), jnp.float32)

    out, new_rm, new_rv = batchnorm1d(x, gamma, beta, rm, rv,
                                      eps=1e-5, momentum=0.1, training=True)
    out = jax.block_until_ready(out)

    xm = jnp.mean(x, axis=(0, 1))
    xv = jnp.var(x, axis=(0, 1), ddof=1)             # torch.var default: unbiased
    ref = gamma * (x - xm) / jnp.sqrt(xv + 1e-5) + beta
    assert jnp.allclose(out, ref, atol=1e-5, rtol=1e-5), "3D output mismatch"
    assert jnp.allclose(new_rm, 0.9 * rm + 0.1 * xm, atol=1e-5, rtol=1e-5), "running_mean mismatch"
    assert jnp.allclose(new_rv, 0.9 * rv + 0.1 * xv, atol=1e-5, rtol=1e-5), "running_var mismatch"

    # --- 2-D case: (N=16, dim=64), training mode ---
    N2, D2 = 16, 64
    x2 = jax.random.normal(k4, (N2, D2), dtype=jnp.float32)
    gamma2 = 1.0 + 0.1 * jax.random.normal(k5, (D2,), dtype=jnp.float32)
    beta2 = 0.1 * jax.random.normal(k6, (D2,), dtype=jnp.float32)
    rm2 = jnp.zeros((D2,), jnp.float32)
    rv2 = jnp.ones((D2,), jnp.float32)

    out2, new_rm2, new_rv2 = batchnorm1d(x2, gamma2, beta2, rm2, rv2,
                                         eps=1e-5, momentum=0.1, training=True)
    out2 = jax.block_until_ready(out2)
    xm2 = jnp.mean(x2, axis=0)
    xv2 = jnp.var(x2, axis=0, ddof=1)
    ref2 = gamma2 * (x2 - xm2) / jnp.sqrt(xv2 + 1e-5) + beta2
    assert jnp.allclose(out2, ref2, atol=1e-5, rtol=1e-5), "2D output mismatch"

    # --- eval mode path (uses running stats) ---
    out3, _, _ = batchnorm1d(x2, gamma2, beta2, new_rm2, new_rv2,
                             eps=1e-5, momentum=0.1, training=False)
    out3 = jax.block_until_ready(out3)
    ref3 = gamma2 * (x2 - new_rm2) / jnp.sqrt(new_rv2 + 1e-5) + beta2
    assert jnp.allclose(out3, ref3, atol=1e-5, rtol=1e-5), "eval output mismatch"

    print("KERNEL_OK")
</pallas_src>

<mosaic_0001>
module attributes {stable_mosaic.version = 11 : i64} {
  func.func @_bn_stats_kernel(%arg0: i32, %arg1: memref<16x128xf32, #tpu.memory_space<vmem>>, %arg2: memref<1x128xf32, #tpu.memory_space<vmem>>, %arg3: memref<1x128xf32, #tpu.memory_space<vmem>>) attributes {dimension_semantics = [#tpu.dimension_semantics<arbitrary>], iteration_bounds = array<i64: 1>, scalar_prefetch = 0 : i64, scratch_operands = 0 : i64, tpu.core_type = #tpu.core_type<tc>, window_params = [{transform_indices = @transform_0, window_bounds = array<i64: 16, 128>}, {pipeline_mode = #tpu.pipeline_mode<synchronous>, transform_indices = @transform_1, window_bounds = array<i64: 1, 128>}, {pipeline_mode = #tpu.pipeline_mode<synchronous>, transform_indices = @transform_2, window_bounds = array<i64: 1, 128>}]} {
    %c0_i32 = arith.constant 0 : i32
    %0 = arith.cmpi eq, %arg0, %c0_i32 : i32
    %1 = arith.extui %0 : i1 to i32
    %c0_i32_0 = arith.constant 0 : i32
    %2 = arith.cmpi ne, %1, %c0_i32_0 : i32
    scf.if %2 {
      %cst_15 = arith.constant 0.000000e+00 : f32
      %26 = vector.broadcast %cst_15 : f32 to vector<1x128xf32>
      %c0_16 = arith.constant 0 : index
      %c0_17 = arith.constant 0 : index
      %27 = vector.load %arg2[%c0_16, %c0_17] : memref<1x128xf32, #tpu.memory_space<vmem>>, vector<1x128xf32>
      tpu.vector_store %arg2[%c0_16, %c0_17], %26 {strides = array<i32>} : memref<1x128xf32, #tpu.memory_space<vmem>>, vector<1x128xf32>,
      %cst_18 = arith.constant 0.000000e+00 : f32
      %28 = vector.broadcast %cst_18 : f32 to vector<1x128xf32>
      %c0_19 = arith.constant 0 : index
      %c0_20 = arith.constant 0 : index
      %29 = vector.load %arg3[%c0_19, %c0_20] : memref<1x128xf32, #tpu.memory_space<vmem>>, vector<1x128xf32>
      tpu.vector_store %arg3[%c0_19, %c0_20], %28 {strides = array<i32>} : memref<1x128xf32, #tpu.memory_space<vmem>>, vector<1x128xf32>,
    } else {
    }
    %c0 = arith.constant 0 : index
    %c0_1 = arith.constant 0 : index
    %3 = vector.load %arg1[%c0, %c0_1] : memref<16x128xf32, #tpu.memory_space<vmem>>, vector<16x128xf32>
    %4 = tpu.iota {dimensions = array<i32: 0>} : vector<16x128xi32>
    %c16_i32 = arith.constant 16 : i32
    %5 = arith.muli %arg0, %c16_i32 : i32
    %6 = vector.broadcast %5 : i32 to vector<16x128xi32>
    %7 = arith.addi %4, %6 : vector<16x128xi32>
    %c16_i32_2 = arith.constant 16 : i32
    %8 = vector.broadcast %c16_i32_2 : i32 to vector<16x128xi32>
    %9 = arith.cmpi slt, %7, %8 : vector<16x128xi32>
    %cst = arith.constant 0.000000e+00 : f32
    %10 = vector.broadcast %cst : f32 to vector<16x128xf32>
    %11 = arith.select %9, %3, %10 : vector<16x128xi1>, vector<16x128xf32>
    %c0_3 = arith.constant 0 : index
    %c0_4 = arith.constant 0 : index
    %12 = vector.load %arg2[%c0_3, %c0_4] : memref<1x128xf32, #tpu.memory_space<vmem>>, vector<1x128xf32>
    %cst_5 = arith.constant dense<0.000000e+00> : vector<128xf32>
    %13 = vector.multi_reduction <add>, %11, %cst_5 [0] : vector<16x128xf32> to vector<128xf32>
    %14 = vector.shape_cast %13 : vector<128xf32> to vector<1x128xf32>
    %15 = arith.addf %12, %14 : vector<1x128xf32>
    %c0_6 = arith.constant 0 : index
    %c0_7 = arith.constant 0 : index
    %16 = vector.load %arg2[%c0_6, %c0_7] : memref<1x128xf32, #tpu.memory_space<vmem>>, vector<1x128xf32>
    tpu.vector_store %arg2[%c0_6, %c0_7], %15 {strides = array<i32>} : memref<1x128xf32, #tpu.memory_space<vmem>>, vector<1x128xf32>,
    %c0_8 = arith.constant 0 : index
    %c0_9 = arith.constant 0 : index
    %17 = vector.load %arg3[%c0_8, %c0_9] : memref<1x128xf32, #tpu.memory_space<vmem>>, vector<1x128xf32>
    %18 = arith.mulf %11, %11 : vector<16x128xf32>
    %cst_10 = arith.constant dense<0.000000e+00> : vector<128xf32>
    %19 = vector.multi_reduction <add>, %18, %cst_10 [0] : vector<16x128xf32> to vector<128xf32>
    %20 = vector.shape_cast %19 : vector<128xf32> to vector<1x128xf32>
    %21 = arith.addf %17, %20 : vector<1x128xf32>
    %c0_11 = arith.constant 0 : index
    %c0_12 = arith.constant 0 : index
    %22 = vector.load %arg3[%c0_11, %c0_12] : memref<1x128xf32, #tpu.memory_space<vmem>>, vector<1x128xf32>
    tpu.vector_store %arg3[%c0_11, %c0_12], %21 {strides = array<i32>} : memref<1x128xf32, #tpu.memory_space<vmem>>, vector<1x128xf32>,
    %c0_i32_13 = arith.constant 0 : i32
    %23 = arith.cmpi eq, %arg0, %c0_i32_13 : i32
    %24 = arith.extui %23 : i1 to i32
    %c0_i32_14 = arith.constant 0 : i32
    %25 = arith.cmpi ne, %24, %c0_i32_14 : i32
    scf.if %25 {
      %c0_15 = arith.constant 0 : index
      %c0_16 = arith.constant 0 : index
      %26 = vector.load %arg2[%c0_15, %c0_16] : memref<1x128xf32, #tpu.memory_space<vmem>>, vector<1x128xf32>
      %cst_17 = arith.constant 6.250000e-02 : f32
      %27 = vector.broadcast %cst_17 : f32 to vector<1x128xf32>
      %28 = arith.mulf %26, %27 : vector<1x128xf32>
      %c0_18 = arith.constant 0 : index
      %c0_19 = arith.constant 0 : index
      %29 = vector.load %arg3[%c0_18, %c0_19] : memref<1x128xf32, #tpu.memory_space<vmem>>, vector<1x128xf32>
      %cst_20 = arith.constant 1.600000e+01 : f32
      %30 = vector.broadcast %cst_20 : f32 to vector<1x128xf32>
      %31 = arith.mulf %30, %28 : vector<1x128xf32>
      %32 = arith.mulf %31, %28 : vector<1x128xf32>
      %33 = arith.subf %29, %32 : vector<1x128xf32>
      %cst_21 = arith.constant 0.0666666701 : f32
      %34 = vector.broadcast %cst_21 : f32 to vector<1x128xf32>
      %35 = arith.mulf %33, %34 : vector<1x128xf32>
      %c0_22 = arith.constant 0 : index
      %c0_23 = arith.constant 0 : index
      %36 = vector.load %arg2[%c0_22, %c0_23] : memref<1x128xf32, #tpu.memory_space<vmem>>, vector<1x128xf32>
      tpu.vector_store %arg2[%c0_22, %c0_23], %28 {strides = array<i32>} : memref<1x128xf32, #tpu.memory_space<vmem>>, vector<1x128xf32>,
      %cst_24 = arith.constant 0.000000e+00 : f32
      %37 = vector.broadcast %cst_24 : f32 to vector<1x128xf32>
      %38 = arith.maximumf %35, %37 : vector<1x128xf32>
      %c0_25 = arith.constant 0 : index
      %c0_26 = arith.constant 0 : index
      %39 = vector.load %arg3[%c0_25, %c0_26] : memref<1x128xf32, #tpu.memory_space<vmem>>, vector<1x128xf32>
      tpu.vector_store %arg3[%c0_25, %c0_26], %38 {strides = array<i32>} : memref<1x128xf32, #tpu.memory_space<vmem>>, vector<1x128xf32>,
    } else {
    }
    return
  }
  func.func @transform_0(%arg0: i32) -> (i32, i32) {
    %c0_i32 = arith.constant 0 : i32
    %c0_i32_0 = arith.constant 0 : i32
    return %arg0, %c0_i32 : i32, i32
  }
  func.func @transform_1(%arg0: i32) -> (i32, i32) {
    %c0_i32 = arith.constant 0 : i32
    %c0_i32_0 = arith.constant 0 : i32
    %c0_i32_1 = arith.constant 0 : i32
    return %c0_i32, %c0_i32_0 : i32, i32
  }
  func.func @transform_2(%arg0: i32) -> (i32, i32) {
    %c0_i32 = arith.constant 0 : i32
    %c0_i32_0 = arith.constant 0 : i32
    %c0_i32_1 = arith.constant 0 : i32
    return %c0_i32, %c0_i32_0 : i32, i32
  }
}

</mosaic_0001>

<llo_original>
// kernel: tpu_custom_call.1
$region0: #{tpu_custom_call.1}
  #allocation0 [shape = 'u32[]', space=smem, size = 0x4, offset = 0x4, fixed_abs, tag = 'smem constant byte address 0x4 - core index']
  #allocation1 [shape = 'u32[144,128]{1,0:T(1,128)}', space=vmem, size = 0x12000, scoped, tag = 'internal scratch']
  %s0 = inlined_call_operand.hbm [shape: f32[16,128], index: 0, kind: input, shape index: {}]
  %s1 = inlined_call_operand.hbm [shape: f32[1,128], index: 1, kind: output, shape index: {0}]
  %s2 = inlined_call_operand.hbm [shape: f32[1,128], index: 2, kind: output, shape index: {1}]
  %3 = xla_tuple %s1, %s2
  %s4 = sld [smem:[#allocation0]]
  $region34: #{tpu_custom_call.1} parent=0
    _
  %s6 = ssub.s32 1, %s4
  %s7 = scalar_select 0, %s6, %s4
  $region1: #{tpu_custom_call.1} parent=0
    #allocation2 [shape = 'u8[8192]{0}', space=vmem, size = 0x2000, scoped, tag = 'input window, operand 0, single buffered']
    #allocation3 [shape = 's32[1]{0}', space=sflag, size = 0x4, scoped, tag = 'scoped memory for tpu_custom_call.1']
    #allocation4 [shape = 's32[1]{0}', space=sflag, size = 0x4, scoped, tag = 'scoped memory for tpu_custom_call.1']
    #allocation5 [shape = 'u8[512]{0}', space=vmem, size = 0x400, scoped, tag = 'output window, operand 0, single buffered']
    #allocation6 [shape = 'u8[512]{0}', space=vmem, size = 0x400, scoped, tag = 'output window, operand 1, single buffered']
    #allocation7 [shape = 's32[1]{0}', space=sflag, size = 0x4, scoped, tag = 'scoped memory for tpu_custom_call.1']
    %8 = vsyncpa [#allocation3], 0
    %9 = vsyncpa [#allocation4], 0
    %10 = vsyncpa [#allocation7], 0
    // Predicated region
    $region2: #{tpu_custom_call.1} parent=1 // pred_check
      _
    $region3: #{tpu_custom_call.1} parent=1 // pred_check_branch
      %12 = sbr.rel (0) target = $region5
    $region4: #{tpu_custom_call.1} parent=1 // pred_region
      %s14 = ssub.s32 256, 256
      %15 = vsyncadd [#allocation3], %s14
      %s16 = sshll.u32 [#allocation2], 4
      %s17 = int_to_ptr.vmem [resolvable:$true] %s16
      %22 = dma.hbm_to_vmem [thread:$0]  %s0, 256, %s17, [#allocation3], 128, 128, 8
    $region5: #{tpu_custom_call.1} parent=1 // pred_fallthru
      _
    // Predicated region
    $region6: #{tpu_custom_call.1} parent=1 // pred_check
      _
    $region7: #{tpu_custom_call.1} parent=1 // pred_check_branch
      %24 = sbr.rel (0) target = $region9
    $region8: #{tpu_custom_call.1} parent=1 // pred_region
      %25 = dma.done [#allocation3], 256
    $region9: #{tpu_custom_call.1} parent=1 // pred_fallthru
      _
    %p26 = scmp.eq.s32.totalorder 0, 0
    // Predicated region
    $region10: #{tpu_custom_call.1} parent=1 // pred_check
      %p27 = pneg %p26
    $region11: #{tpu_custom_call.1} parent=1 // pred_check_branch
      %29 = sbr.rel (%p27) target = $region13
    $region12: #{tpu_custom_call.1} parent=1 // pred_region
      %30 = vst [vmem:[#allocation5] sm:$0x1] 0.0
      %31 = vst [vmem:[#allocation6] sm:$0x1] 0.0
    $region13: #{tpu_custom_call.1} parent=1 // pred_fallthru
      _
    %v32 = vld [vmem:[#allocation2] sm:$0xff]
    %v33 = vld [vmem:[#allocation2 + $0x8] sm:$0xff]
    %v34 = vlaneseq
    %v35 = vshrl.u32 %v34, 7
    %v36 = vadd.s32 %v35, 8
    %s37 = smul.u32 0, 16
    %v38 = vstv %s37
    %v39 = vadd.s32 %v35, %v38
    %v40 = vadd.s32 %v36, %v38
    %vm41 = vcmp.lt.s32.totalorder %v39, 16
    %vm42 = vcmp.lt.s32.totalorder %v40, 16
    %v43 = vsel %vm41, %v32, 0.0
    %v44 = vsel %vm42, %v33, 0.0
    %v45 = vld [vmem:[#allocation5] sm:$0x1]
    %v46 = vadd.f32 %v43, %v44
    %v47 = vrot.slane %v46, 4
    %v48 = vadd.f32 %v46, %v47
    %v49 = vrot.slane %v48, 2
    %v50 = vadd.f32 %v48, %v49
    %v51 = vrot.slane %v50, 1
    %v52 = vadd.f32 %v50, %v51
    %v53 = vadd.f32 %v45, %v52
    %54 = vst [vmem:[#allocation5] sm:$0x1] %v53
    %v55 = vld [vmem:[#allocation6] sm:$0x1]
    %v56 = vmul.f32 %v43, %v43
    %v57 = vmul.f32 %v44, %v44
    %v58 = vadd.f32 %v56, %v57
    %v59 = vrot.slane %v58, 4
    %v60 = vadd.f32 %v58, %v59
    %v61 = vrot.slane %v60, 2
    %v62 = vadd.f32 %v60, %v61
    %v63 = vrot.slane %v62, 1
    %v64 = vadd.f32 %v62, %v63
    %v65 = vadd.f32 %v55, %v64
    %66 = vst [vmem:[#allocation6] sm:$0x1] %v65
    // Predicated region
    $region14: #{tpu_custom_call.1} parent=1 // pred_check
      %p67 = pneg %p26
    $region15: #{tpu_custom_call.1} parent=1 // pred_check_branch
      %69 = sbr.rel (%p67) target = $region17
    $region16: #{tpu_custom_call.1} parent=1 // pred_region
      %v70 = vld [vmem:[#allocation5] sm:$0x1]
      %v71 = vmul.f32 %v70, 0.0625
      %v72 = vld [vmem:[#allocation6] sm:$0x1]
      %v73 = vmul.f32 %v71, 16.0
      %v74 = vmul.f32 %v73, %v71
      %v75 = vsub.f32 %v72, %v74
      %v76 = vmul.f32 %v75, 0.06666667
      %77 = vst [vmem:[#allocation5] sm:$0x1] %v71
      %v78 = vmax.f32 %v76, 0.0
      %79 = vst [vmem:[#allocation6] sm:$0x1] %v78
    $region17: #{tpu_custom_call.1} parent=1 // pred_fallthru
      _
    // Predicated region
    $region18: #{tpu_custom_call.1} parent=1 // pred_check
      _
    $region19: #{tpu_custom_call.1} parent=1 // pred_check_branch
      %81 = sbr.rel (0) target = $region21
    $region20: #{tpu_custom_call.1} parent=1 // pred_region
      %s83 = ssub.s32 16, 16
      %84 = vsyncadd [#allocation4], %s83
      %s86 = sshll.u32 [#allocation5], 4
      %s87 = int_to_ptr.vmem [resolvable:$true] %s86
      %89 = dma.vmem_to_hbm [thread:$0]  %s87, 16, %s1, [#allocation4]
    $region21: #{tpu_custom_call.1} parent=1 // pred_fallthru
      _
    // Predicated region
    $region22: #{tpu_custom_call.1} parent=1 // pred_check
      _
    $region23: #{tpu_custom_call.1} parent=1 // pred_check_branch
      %91 = sbr.rel (0) target = $region25
    $region24: #{tpu_custom_call.1} parent=1 // pred_region
      %s93 = ssub.s32 16, 16
      %94 = vsyncadd [#allocation7], %s93
      %s96 = sshll.u32 [#allocation6], 4
      %s97 = int_to_ptr.vmem [resolvable:$true] %s96
      %99 = dma.vmem_to_hbm [thread:$0]  %s97, 16, %s2, [#allocation7]
    $region25: #{tpu_custom_call.1} parent=1 // pred_fallthru
      _
    // Predicated region
    $region26: #{tpu_custom_call.1} parent=1 // pred_check
      _
    $region27: #{tpu_custom_call.1} parent=1 // pred_check_branch
      %101 = sbr.rel (0) target = $region29
    $region28: #{tpu_custom_call.1} parent=1 // pred_region
      %102 = dma.done [#allocation4], 16
    $region29: #{tpu_custom_call.1} parent=1 // pred_fallthru
      _
    // Predicated region
    $region30: #{tpu_custom_call.1} parent=1 // pred_check
      _
    $region31: #{tpu_custom_call.1} parent=1 // pred_check_branch
      %104 = sbr.rel (0) target = $region33
    $region32: #{tpu_custom_call.1} parent=1 // pred_region
      %105 = dma.done [#allocation7], 16
    $region33: #{tpu_custom_call.1} parent=1 // pred_fallthru
      _
    %106 = vsyncpa [#allocation3], 1
    %107 = vsyncpa [#allocation4], 1
    %108 = vsyncpa [#allocation7], 1

</llo_original>
